<compile_context>
chip_gen: v6e
topology: v6e:2x2x1
jax: 0.10.0
libtpu: 0.0.40
codegen_flags: <defaults>
</compile_context>

<pallas_src>
import functools
import math

import jax
import jax.numpy as jnp
from jax.experimental import pallas as pl
from jax.experimental.pallas import tpu as pltpu


_NEG_BIG = -1e9  # finite (NOT -inf, so x*t stays 0*finite = 0, never NaN)


def _mixed_loss_kernel(x_ref, t_ref, acc_ref, *, alpha, gamma, chunk,
                       approx_recip):
    """Streams one (R, lane_tile) tile, accumulating lane-dense (R,128) sums."""

    @pl.when(pl.program_id(1) == 0)
    def _():
        acc_ref[...] = jnp.zeros_like(acc_ref)

    rows, lanes = x_ref.shape
    n_chunks = lanes // chunk
    n_fold = chunk // 128
    g = float(gamma)

    def _fold128(v):
        # (R, chunk) -> (R, 128) balanced tree of VPU adds.
        if n_fold == 1:
            return v
        parts = [v[:, j * 128:(j + 1) * 128] for j in range(n_fold)]
        while len(parts) > 1:
            nxt = [parts[i] + parts[i + 1] for i in range(0, len(parts) - 1, 2)]
            if len(parts) % 2:
                nxt.append(parts[-1])
            parts = nxt
        return parts[0]

    def _chunk_partials(c):
        start = pl.multiple_of(c * chunk, chunk)
        x = x_ref[:, pl.ds(start, chunk)].astype(jnp.float32)
        t = t_ref[:, pl.ds(start, chunk)].astype(jnp.float32)

        # One shared exp(-|x|) drives sigmoid and the stable BCE-with-logits.
        e = jnp.exp(-jnp.abs(x))
        one_pe = 1.0 + e
        if approx_recip:
            inv = pl.reciprocal(one_pe, approx=True)
        else:
            inv = 1.0 / one_pe
        p = jnp.where(x >= 0, inv, e * inv)              # sigmoid(x)
        ce = jnp.maximum(x, 0.0) - x * t + jnp.log1p(e)  # BCE with logits

        pt = p * t                                       # reused for dice
        m = p + t - 2.0 * pt                             # == 1 - p_t
        if g == 2.0:
            mod = m * m
        elif g == 1.0:
            mod = m
        elif g == 0.0:
            mod = None
        elif g.is_integer() and 0.0 < g <= 8.0:
            mod = m
            for _ in range(int(g) - 1):
                mod = mod * m
        else:
            mod = m ** g
        alpha_t = (1.0 - alpha) + (2.0 * alpha - 1.0) * t
        focal = alpha_t * ce if mod is None else alpha_t * ce * mod
        return _fold128(focal), _fold128(pt), _fold128(t), _fold128(p)

    if n_chunks == 1:
        f_p, pt_p, t_p, p_p = _chunk_partials(0)
    else:
        def body(c, carry):
            af, apt, at, ap = carry
            fc, ptc, tc, pc = _chunk_partials(c)
            return (af + fc, apt + ptc, at + tc, ap + pc)

        z = jnp.zeros((rows, 128), jnp.float32)
        f_p, pt_p, t_p, p_p = jax.lax.fori_loop(
            0, n_chunks, body, (z, z, z, z), unroll=min(8, n_chunks))

    # Lane-wide accumulation into the resident output block (128-lane stores).
    acc_ref[0, 0, :, :] += f_p    # focal-loss partial sums
    acc_ref[0, 1, :, :] += pt_p   # intersection: sum(p * t)
    acc_ref[0, 2, :, :] += t_p    # ground: sum(t)
    acc_ref[0, 3, :, :] += p_p    # prediction: sum(p)


def _tpu_device_kind():
    try:
        dev = jax.devices()[0]
        if dev.platform != "tpu":
            return ""
        return str(getattr(dev, "device_kind", "")).lower()
    except Exception:
        return ""


def mixed_loss(inputs, targets, *, alpha=0.25, gamma=2.0,
               smooth_nr=1e-5, smooth_dr=1e-5,
               lane_tile=None, num_splits=None,
               targets_bf16=None, approx_reciprocal=False):
    """inputs/targets: NCHW (or N,C,spatial...) arrays of identical shape.

    bf16 logits are accepted (cast to f32 in-register). `targets_bf16=True`
    casts targets to bf16 in the wrapper (lossless for binary / small-integer
    masks); by default it is auto-enabled only for bool/integer targets.
    `approx_reciprocal=True` uses the EUP approx vrcp for the sigmoid
    (~1e-4-level error; worthwhile only when compute-bound, e.g. v7x / bf16).
    """
    B, C = inputs.shape[:2]
    BC = B * C
    HW = 1
    for d in inputs.shape[2:]:
        HW *= d

    x = inputs
    t = targets
    if not jnp.issubdtype(x.dtype, jnp.floating):
        x = x.astype(jnp.float32)
    if targets_bf16 is None:
        targets_bf16 = (jnp.issubdtype(t.dtype, jnp.bool_)
                        or jnp.issubdtype(t.dtype, jnp.integer))
    if targets_bf16:
        t = t.astype(jnp.bfloat16)
    elif not jnp.issubdtype(t.dtype, jnp.floating):
        t = t.astype(jnp.float32)

    x = x.reshape(BC, HW)
    t = t.reshape(BC, HW)
    x_item = jnp.dtype(x.dtype).itemsize
    t_item = jnp.dtype(t.dtype).itemsize

    # --- fold rows so sublanes are fully packed (8 for f32, 16 for bf16) -----
    fold_base = 16 if min(x_item, t_item) <= 2 else 8
    fold_r = fold_base // math.gcd(BC, fold_base)    # power of two
    R = BC * fold_r
    HWp = fold_r * pl.cdiv(HW, fold_r)
    L = HWp // fold_r                                # per-folded-row length
    if HWp != HW:
        # Neutral padding: x=-1e9, t=0  =>  focal = pt = t = p = 0 exactly.
        x = jnp.pad(x, ((0, 0), (0, HWp - HW)), constant_values=_NEG_BIG)
        t = jnp.pad(t, ((0, 0), (0, HWp - HW)), constant_values=0)
    if fold_r > 1:
        x = x.reshape(R, L)
        t = t.reshape(R, L)

    # --- lane tile: ~2 MiB per input tile, multiple of 128, <= 32768 ---------
    if lane_tile is None:
        lane_tile = ((2 << 20) // (x_item * R)) // 128 * 128
    lane_tile = int(max(128, min(32768, int(lane_tile) // 128 * 128)))
    lane_tile = min(lane_tile, pl.cdiv(L, 128) * 128)
    chunk = 512
    while lane_tile % chunk:
        chunk //= 2                                   # ends at a 128 multiple

    n_tiles = pl.cdiv(L, lane_tile)
    if num_splits is None:
        # Only v7x has 2 TensorCores per chip; elsewhere a split is pure waste.
        is_v7x = "v7" in _tpu_device_kind()
        num_splits = 2 if (is_v7x and n_tiles >= 2) else 1
    num_splits = max(1, min(int(num_splits), n_tiles))
    tiles_per_split = pl.cdiv(n_tiles, num_splits)
    Lp = num_splits * tiles_per_split * lane_tile
    if Lp != L:
        x = jnp.pad(x, ((0, 0), (0, Lp - L)), constant_values=_NEG_BIG)
        t = jnp.pad(t, ((0, 0), (0, Lp - L)), constant_values=0)

    kernel = functools.partial(
        _mixed_loss_kernel,
        alpha=float(alpha), gamma=float(gamma), chunk=chunk,
        approx_recip=bool(approx_reciprocal))

    n_elems = R * Lp
    cost = pl.CostEstimate(
        flops=25 * n_elems,
        transcendentals=2 * n_elems,
        bytes_accessed=n_elems * (x_item + t_item)
        + num_splits * 4 * R * 128 * 4)

    tile_bytes = R * lane_tile * (x_item + t_item)
    vmem_limit = int(min(48 << 20, max(16 << 20, 2 * tile_bytes + (4 << 20))))

    acc = pl.pallas_call(
        kernel,
        out_shape=jax.ShapeDtypeStruct((num_splits, 4, R, 128), jnp.float32),
        grid_spec=pltpu.PrefetchScalarGridSpec(
            num_scalar_prefetch=0,
            grid=(num_splits, tiles_per_split),
            in_specs=[
                pl.BlockSpec((R, lane_tile),
                             lambda s, k: (0, s * tiles_per_split + k)),
                pl.BlockSpec((R, lane_tile),
                             lambda s, k: (0, s * tiles_per_split + k)),
            ],
            out_specs=pl.BlockSpec((1, 4, R, 128),
                                   lambda s, k: (s, 0, 0, 0)),
        ),
        compiler_params=pltpu.CompilerParams(
            dimension_semantics=("parallel", "arbitrary"),
            vmem_limit_bytes=vmem_limit),
        cost_estimate=cost,
    )(x, t)

    # --- tiny final reduction in plain JAX -----------------------------------
    acc = jnp.sum(acc, axis=(0, 3))                   # (4, R)
    focal_mean = jnp.sum(acc[0]) / (BC * HW)
    inter = jnp.sum(acc[1].reshape(BC, fold_r), axis=1)
    ground = jnp.sum(acc[2].reshape(BC, fold_r), axis=1)
    pred = jnp.sum(acc[3].reshape(BC, fold_r), axis=1)
    dice = 1.0 - (2.0 * inter + smooth_nr) / (ground + pred + smooth_dr)
    dice_mean = jnp.mean(dice)
    return focal_mean - jnp.log(1.0 - dice_mean)


def _mixed_loss_reference(inputs, targets, alpha=0.25, gamma=2.0,
                          smooth_nr=1e-5, smooth_dr=1e-5):
    """Pure-JAX reference mirroring torchvision + MONAI semantics."""
    x = inputs.astype(jnp.float32)
    t = targets.astype(jnp.float32)
    p = jax.nn.sigmoid(x)
    ce = jnp.maximum(x, 0.0) - x * t + jnp.log1p(jnp.exp(-jnp.abs(x)))
    p_t = p * t + (1 - p) * (1 - t)
    focal = (alpha * t + (1 - alpha) * (1 - t)) * ce * (1 - p_t) ** gamma
    focal_mean = jnp.mean(focal)

    reduce_axes = tuple(range(2, inputs.ndim))
    inter = jnp.sum(p * t, axis=reduce_axes)
    ground = jnp.sum(t, axis=reduce_axes)
    pred = jnp.sum(p, axis=reduce_axes)
    dice = 1.0 - (2.0 * inter + smooth_nr) / (ground + pred + smooth_dr)
    dice_mean = jnp.mean(dice)
    return focal_mean - jnp.log(1.0 - dice_mean)


if __name__ == "__main__":
    key = jax.random.PRNGKey(0)
    k1, k2, k3, k4, k5, k6 = jax.random.split(key, 6)

    # Case 1: nicely aligned shapes (BC multiple of 8, HW multiple of 128), f32.
    B, C, H, W = 2, 4, 16, 16
    xb = jax.random.normal(k1, (B, C, H, W), dtype=jnp.float32)
    tb = jax.random.bernoulli(k2, 0.5, (B, C, H, W)).astype(jnp.float32)
    loss = jax.block_until_ready(mixed_loss(xb, tb))
    ref = _mixed_loss_reference(xb, tb)
    assert jnp.allclose(loss, ref, atol=2e-5, rtol=2e-5), (loss, ref)

    # Case 2: awkward shapes exercising row folding + neutral-value padding,
    # with binary targets explicitly carried as bf16 (lossless).
    B2, C2, H2, W2 = 1, 3, 10, 13
    xc = jax.random.normal(k3, (B2, C2, H2, W2), dtype=jnp.float32)
    tc = jax.random.bernoulli(k4, 0.3, (B2, C2, H2, W2)).astype(jnp.float32)
    loss2 = jax.block_until_ready(mixed_loss(xc, tc, targets_bf16=True))
    ref2 = _mixed_loss_reference(xc, tc)
    assert jnp.allclose(loss2, ref2, atol=2e-5, rtol=2e-5), (loss2, ref2)

    # Case 3: bf16 logits + bool targets (auto bf16), multi-chunk inner loop.
    B3, C3, H3, W3 = 2, 2, 64, 96
    xd = jax.random.normal(k5, (B3, C3, H3, W3), dtype=jnp.bfloat16)
    td = jax.random.bernoulli(k6, 0.4, (B3, C3, H3, W3))
    loss3 = jax.block_until_ready(mixed_loss(xd, td))
    ref3 = _mixed_loss_reference(xd, td)
    assert jnp.allclose(loss3, ref3, atol=2e-5, rtol=2e-5), (loss3, ref3)

    print("KERNEL_OK")
</pallas_src>

<mosaic_0001>
module attributes {stable_mosaic.version = 11 : i64} {
  func.func @_mixed_loss_kernel(%arg0: i32, %arg1: i32, %arg2: memref<8x256xf32, #tpu.memory_space<vmem>>, %arg3: memref<8x256xf32, #tpu.memory_space<vmem>>, %arg4: memref<1x4x8x128xf32, #tpu.memory_space<vmem>>) attributes {dimension_semantics = [#tpu.dimension_semantics<parallel>, #tpu.dimension_semantics<arbitrary>], iteration_bounds = array<i64: 1, 1>, scalar_prefetch = 0 : i64, scratch_operands = 0 : i64, tpu.core_type = #tpu.core_type<tc>, window_params = [{transform_indices = @transform_0, window_bounds = array<i64: 8, 256>}, {transform_indices = @transform_1, window_bounds = array<i64: 8, 256>}, {transform_indices = @transform_2, window_bounds = array<i64: 1, 4, 8, 128>}]} {
    %c0_i32 = arith.constant 0 : i32
    %0 = arith.cmpi eq, %arg1, %c0_i32 : i32
    %1 = arith.extui %0 : i1 to i32
    %c0_i32_0 = arith.constant 0 : i32
    %2 = arith.cmpi ne, %1, %c0_i32_0 : i32
    scf.if %2 {
      %cst_39 = arith.constant 0.000000e+00 : f32
      %74 = vector.broadcast %cst_39 : f32 to vector<1x4x8x128xf32>
      %c0_40 = arith.constant 0 : index
      %c0_41 = arith.constant 0 : index
      %c0_42 = arith.constant 0 : index
      %c0_43 = arith.constant 0 : index
      %75 = vector.load %arg4[%c0_40, %c0_41, %c0_42, %c0_43] : memref<1x4x8x128xf32, #tpu.memory_space<vmem>>, vector<1x4x8x128xf32>
      tpu.vector_store %arg4[%c0_40, %c0_41, %c0_42, %c0_43], %74 {strides = array<i32>} : memref<1x4x8x128xf32, #tpu.memory_space<vmem>>, vector<1x4x8x128xf32>,
    } else {
    }
    %c0_i32_1 = arith.constant 0 : i32
    %3 = tpu.assume_multiple %c0_i32_1, 256 : i32
    %c0 = arith.constant 0 : index
    %4 = arith.index_cast %3 : i32 to index
    %5 = vector.load %arg2[%c0, %4] : memref<8x256xf32, #tpu.memory_space<vmem>>, vector<8x256xf32>
    %c0_2 = arith.constant 0 : index
    %6 = arith.index_cast %3 : i32 to index
    %7 = vector.load %arg3[%c0_2, %6] : memref<8x256xf32, #tpu.memory_space<vmem>>, vector<8x256xf32>
    %8 = math.absf %5 : vector<8x256xf32>
    %cst = arith.constant 0.000000e+00 : f32
    %9 = vector.broadcast %cst : f32 to vector<8x256xf32>
    %10 = arith.subf %9, %8 : vector<8x256xf32>
    %11 = math.exp %10 : vector<8x256xf32>
    %cst_3 = arith.constant 1.000000e+00 : f32
    %12 = vector.broadcast %cst_3 : f32 to vector<8x256xf32>
    %13 = arith.addf %12, %11 : vector<8x256xf32>
    %cst_4 = arith.constant 1.000000e+00 : f32
    %14 = vector.broadcast %cst_4 : f32 to vector<8x256xf32>
    %15 = arith.divf %14, %13 : vector<8x256xf32>
    %cst_5 = arith.constant 0.000000e+00 : f32
    %16 = vector.broadcast %cst_5 : f32 to vector<8x256xf32>
    %17 = arith.cmpf oge, %5, %16 : vector<8x256xf32>
    %18 = arith.mulf %11, %15 : vector<8x256xf32>
    %19 = arith.select %17, %15, %18 : vector<8x256xi1>, vector<8x256xf32>
    %cst_6 = arith.constant 0.000000e+00 : f32
    %20 = vector.broadcast %cst_6 : f32 to vector<8x256xf32>
    %21 = arith.maximumf %5, %20 : vector<8x256xf32>
    %22 = arith.mulf %5, %7 : vector<8x256xf32>
    %23 = arith.subf %21, %22 : vector<8x256xf32>
    %24 = math.log1p %11 : vector<8x256xf32>
    %25 = arith.addf %23, %24 : vector<8x256xf32>
    %26 = arith.mulf %19, %7 : vector<8x256xf32>
    %27 = arith.addf %19, %7 : vector<8x256xf32>
    %cst_7 = arith.constant 2.000000e+00 : f32
    %28 = vector.broadcast %cst_7 : f32 to vector<8x256xf32>
    %29 = arith.mulf %28, %26 : vector<8x256xf32>
    %30 = arith.subf %27, %29 : vector<8x256xf32>
    %31 = arith.mulf %30, %30 : vector<8x256xf32>
    %cst_8 = arith.constant -5.000000e-01 : f32
    %32 = vector.broadcast %cst_8 : f32 to vector<8x256xf32>
    %33 = arith.mulf %32, %7 : vector<8x256xf32>
    %cst_9 = arith.constant 7.500000e-01 : f32
    %34 = vector.broadcast %cst_9 : f32 to vector<8x256xf32>
    %35 = arith.addf %34, %33 : vector<8x256xf32>
    %36 = arith.mulf %35, %25 : vector<8x256xf32>
    %37 = arith.mulf %36, %31 : vector<8x256xf32>
    %38 = vector.extract_strided_slice %37 {offsets = [0, 0], sizes = [8, 128], strides = [1, 1]} : vector<8x256xf32> to vector<8x128xf32>
    %39 = vector.extract_strided_slice %37 {offsets = [0, 128], sizes = [8, 128], strides = [1, 1]} : vector<8x256xf32> to vector<8x128xf32>
    %40 = arith.addf %38, %39 : vector<8x128xf32>
    %41 = vector.extract_strided_slice %26 {offsets = [0, 0], sizes = [8, 128], strides = [1, 1]} : vector<8x256xf32> to vector<8x128xf32>
    %42 = vector.extract_strided_slice %26 {offsets = [0, 128], sizes = [8, 128], strides = [1, 1]} : vector<8x256xf32> to vector<8x128xf32>
    %43 = arith.addf %41, %42 : vector<8x128xf32>
    %44 = vector.extract_strided_slice %7 {offsets = [0, 0], sizes = [8, 128], strides = [1, 1]} : vector<8x256xf32> to vector<8x128xf32>
    %45 = vector.extract_strided_slice %7 {offsets = [0, 128], sizes = [8, 128], strides = [1, 1]} : vector<8x256xf32> to vector<8x128xf32>
    %46 = arith.addf %44, %45 : vector<8x128xf32>
    %47 = vector.extract_strided_slice %19 {offsets = [0, 0], sizes = [8, 128], strides = [1, 1]} : vector<8x256xf32> to vector<8x128xf32>
    %48 = vector.extract_strided_slice %19 {offsets = [0, 128], sizes = [8, 128], strides = [1, 1]} : vector<8x256xf32> to vector<8x128xf32>
    %49 = arith.addf %47, %48 : vector<8x128xf32>
    %c0_10 = arith.constant 0 : index
    %c0_11 = arith.constant 0 : index
    %c0_12 = arith.constant 0 : index
    %c0_13 = arith.constant 0 : index
    %50 = vector.load %arg4[%c0_10, %c0_11, %c0_12, %c0_13] : memref<1x4x8x128xf32, #tpu.memory_space<vmem>>, vector<1x1x8x128xf32>
    %51 = vector.shape_cast %50 : vector<1x1x8x128xf32> to vector<8x128xf32>
    %52 = arith.addf %51, %40 : vector<8x128xf32>
    %c0_14 = arith.constant 0 : index
    %c0_15 = arith.constant 0 : index
    %c0_16 = arith.constant 0 : index
    %c0_17 = arith.constant 0 : index
    %53 = vector.load %arg4[%c0_14, %c0_15, %c0_16, %c0_17] : memref<1x4x8x128xf32, #tpu.memory_space<vmem>>, vector<1x1x8x128xf32>
    %54 = vector.shape_cast %53 : vector<1x1x8x128xf32> to vector<8x128xf32>
    %55 = vector.shape_cast %52 : vector<8x128xf32> to vector<1x1x8x128xf32>
    tpu.vector_store %arg4[%c0_14, %c0_15, %c0_16, %c0_17], %55 {strides = array<i32>} : memref<1x4x8x128xf32, #tpu.memory_space<vmem>>, vector<1x1x8x128xf32>,
    %c0_18 = arith.constant 0 : index
    %c1 = arith.constant 1 : index
    %c0_19 = arith.constant 0 : index
    %c0_20 = arith.constant 0 : index
    %56 = vector.load %arg4[%c0_18, %c1, %c0_19, %c0_20] : memref<1x4x8x128xf32, #tpu.memory_space<vmem>>, vector<1x1x8x128xf32>
    %57 = vector.shape_cast %56 : vector<1x1x8x128xf32> to vector<8x128xf32>
    %58 = arith.addf %57, %43 : vector<8x128xf32>
    %c0_21 = arith.constant 0 : index
    %c1_22 = arith.constant 1 : index
    %c0_23 = arith.constant 0 : index
    %c0_24 = arith.constant 0 : index
    %59 = vector.load %arg4[%c0_21, %c1_22, %c0_23, %c0_24] : memref<1x4x8x128xf32, #tpu.memory_space<vmem>>, vector<1x1x8x128xf32>
    %60 = vector.shape_cast %59 : vector<1x1x8x128xf32> to vector<8x128xf32>
    %61 = vector.shape_cast %58 : vector<8x128xf32> to vector<1x1x8x128xf32>
    tpu.vector_store %arg4[%c0_21, %c1_22, %c0_23, %c0_24], %61 {strides = array<i32>} : memref<1x4x8x128xf32, #tpu.memory_space<vmem>>, vector<1x1x8x128xf32>,
    %c0_25 = arith.constant 0 : index
    %c2 = arith.constant 2 : index
    %c0_26 = arith.constant 0 : index
    %c0_27 = arith.constant 0 : index
    %62 = vector.load %arg4[%c0_25, %c2, %c0_26, %c0_27] : memref<1x4x8x128xf32, #tpu.memory_space<vmem>>, vector<1x1x8x128xf32>
    %63 = vector.shape_cast %62 : vector<1x1x8x128xf32> to vector<8x128xf32>
    %64 = arith.addf %63, %46 : vector<8x128xf32>
    %c0_28 = arith.constant 0 : index
    %c2_29 = arith.constant 2 : index
    %c0_30 = arith.constant 0 : index
    %c0_31 = arith.constant 0 : index
    %65 = vector.load %arg4[%c0_28, %c2_29, %c0_30, %c0_31] : memref<1x4x8x128xf32, #tpu.memory_space<vmem>>, vector<1x1x8x128xf32>
    %66 = vector.shape_cast %65 : vector<1x1x8x128xf32> to vector<8x128xf32>
    %67 = vector.shape_cast %64 : vector<8x128xf32> to vector<1x1x8x128xf32>
    tpu.vector_store %arg4[%c0_28, %c2_29, %c0_30, %c0_31], %67 {strides = array<i32>} : memref<1x4x8x128xf32, #tpu.memory_space<vmem>>, vector<1x1x8x128xf32>,
    %c0_32 = arith.constant 0 : index
    %c3 = arith.constant 3 : index
    %c0_33 = arith.constant 0 : index
    %c0_34 = arith.constant 0 : index
    %68 = vector.load %arg4[%c0_32, %c3, %c0_33, %c0_34] : memref<1x4x8x128xf32, #tpu.memory_space<vmem>>, vector<1x1x8x128xf32>
    %69 = vector.shape_cast %68 : vector<1x1x8x128xf32> to vector<8x128xf32>
    %70 = arith.addf %69, %49 : vector<8x128xf32>
    %c0_35 = arith.constant 0 : index
    %c3_36 = arith.constant 3 : index
    %c0_37 = arith.constant 0 : index
    %c0_38 = arith.constant 0 : index
    %71 = vector.load %arg4[%c0_35, %c3_36, %c0_37, %c0_38] : memref<1x4x8x128xf32, #tpu.memory_space<vmem>>, vector<1x1x8x128xf32>
    %72 = vector.shape_cast %71 : vector<1x1x8x128xf32> to vector<8x128xf32>
    %73 = vector.shape_cast %70 : vector<8x128xf32> to vector<1x1x8x128xf32>
    tpu.vector_store %arg4[%c0_35, %c3_36, %c0_37, %c0_38], %73 {strides = array<i32>} : memref<1x4x8x128xf32, #tpu.memory_space<vmem>>, vector<1x1x8x128xf32>,
    return
  }
  func.func @transform_0(%arg0: i32, %arg1: i32) -> (i32, i32) {
    %c1_i32 = arith.constant 1 : i32
    %0 = arith.muli %arg0, %c1_i32 : i32
    %1 = arith.addi %0, %arg1 : i32
    %c0_i32 = arith.constant 0 : i32
    %c0_i32_0 = arith.constant 0 : i32
    return %c0_i32, %1 : i32, i32
  }
  func.func @transform_1(%arg0: i32, %arg1: i32) -> (i32, i32) {
    %c1_i32 = arith.constant 1 : i32
    %0 = arith.muli %arg0, %c1_i32 : i32
    %1 = arith.addi %0, %arg1 : i32
    %c0_i32 = arith.constant 0 : i32
    %c0_i32_0 = arith.constant 0 : i32
    return %c0_i32, %1 : i32, i32
  }
  func.func @transform_2(%arg0: i32, %arg1: i32) -> (i32, i32, i32, i32) {
    %c0_i32 = arith.constant 0 : i32
    %c0_i32_0 = arith.constant 0 : i32
    %c0_i32_1 = arith.constant 0 : i32
    %c0_i32_2 = arith.constant 0 : i32
    return %arg0, %c0_i32, %c0_i32_0, %c0_i32_1 : i32, i32, i32, i32
  }
}

</mosaic_0001>

<llo_original>
// kernel: tpu_custom_call.1
$region0: #{tpu_custom_call.1}
  #allocation0 [shape = 'u32[]', space=smem, size = 0x4, offset = 0x4, fixed_abs, tag = 'smem constant byte address 0x4 - core index']
  #allocation1 [shape = 'u32[144,128]{1,0:T(1,128)}', space=vmem, size = 0x12000, scoped, tag = 'internal scratch']
  %s0 = inlined_call_operand.hbm [shape: f32[8,256], index: 0, kind: input, shape index: {}]
  %s1 = inlined_call_operand.hbm [shape: f32[8,256], index: 1, kind: input, shape index: {}]
  %s2 = inlined_call_operand.hbm [shape: f32[1,4,8,128], index: 2, kind: output, shape index: {}]
  %s3 = sld [smem:[#allocation0]]
  $region30: #{tpu_custom_call.1} parent=0
    _
  %s5 = ssub.s32 1, %s3
  %s6 = scalar_select 0, %s5, %s3
  $region1: #{tpu_custom_call.1} parent=0
    #allocation2 [shape = 'u8[8192]{0}', space=vmem, size = 0x2000, scoped, tag = 'input window, operand 0, single buffered']
    #allocation3 [shape = 's32[1]{0}', space=sflag, size = 0x4, scoped, tag = 'scoped memory for tpu_custom_call.1']
    #allocation4 [shape = 's32[1]{0}', space=sflag, size = 0x4, scoped, tag = 'scoped memory for tpu_custom_call.1']
    #allocation5 [shape = 'u8[8192]{0}', space=vmem, size = 0x2000, scoped, tag = 'input window, operand 1, single buffered']
    #allocation6 [shape = 's32[1]{0}', space=sflag, size = 0x4, scoped, tag = 'scoped memory for tpu_custom_call.1']
    #allocation7 [shape = 'u8[16384]{0}', space=vmem, size = 0x4000, scoped, tag = 'output window, operand 0, single buffered']
    %7 = vsyncpa [#allocation3], 0
    %8 = vsyncpa [#allocation6], 0
    %9 = vsyncpa [#allocation4], 0
    // Predicated region
    $region2: #{tpu_custom_call.1} parent=1 // pred_check
      _
    $region3: #{tpu_custom_call.1} parent=1 // pred_check_branch
      %11 = sbr.rel (0) target = $region5
    $region4: #{tpu_custom_call.1} parent=1 // pred_region
      %s12 = sadd.s32 0, 0
      %s13 = smul.u32 2, %s12
      %s15 = ssub.s32 256, 256
      %16 = vsyncadd [#allocation3], %s15
      %s17 = smul.addr %s13, 128
      %s18 = scalar_lea.hbm %s0, %s17
      %s20 = sshll.u32 [#allocation2], 4
      %s21 = int_to_ptr.vmem [resolvable:$true] %s20
      %23 = dma.hbm_to_vmem [thread:$0]  %s18, 256, %s21, [#allocation3]
    $region5: #{tpu_custom_call.1} parent=1 // pred_fallthru
      _
    // Predicated region
    $region6: #{tpu_custom_call.1} parent=1 // pred_check
      _
    $region7: #{tpu_custom_call.1} parent=1 // pred_check_branch
      %25 = sbr.rel (0) target = $region9
    $region8: #{tpu_custom_call.1} parent=1 // pred_region
      %s26 = sadd.s32 0, 0
      %s27 = smul.u32 2, %s26
      %s29 = ssub.s32 256, 256
      %30 = vsyncadd [#allocation6], %s29
      %s31 = smul.addr %s27, 128
      %s32 = scalar_lea.hbm %s1, %s31
      %s34 = sshll.u32 [#allocation5], 4
      %s35 = int_to_ptr.vmem [resolvable:$true] %s34
      %37 = dma.hbm_to_vmem [thread:$0]  %s32, 256, %s35, [#allocation6]
    $region9: #{tpu_custom_call.1} parent=1 // pred_fallthru
      _
    // Predicated region
    $region10: #{tpu_custom_call.1} parent=1 // pred_check
      _
    $region11: #{tpu_custom_call.1} parent=1 // pred_check_branch
      %39 = sbr.rel (0) target = $region13
    $region12: #{tpu_custom_call.1} parent=1 // pred_region
      %40 = dma.done [#allocation3], 256
    $region13: #{tpu_custom_call.1} parent=1 // pred_fallthru
      _
    // Predicated region
    $region14: #{tpu_custom_call.1} parent=1 // pred_check
      _
    $region15: #{tpu_custom_call.1} parent=1 // pred_check_branch
      %42 = sbr.rel (0) target = $region17
    $region16: #{tpu_custom_call.1} parent=1 // pred_region
      %43 = dma.done [#allocation6], 256
    $region17: #{tpu_custom_call.1} parent=1 // pred_fallthru
      _
    %s44 = sadd.s32 0, 0
    %s45 = smul.u32 2, %s44
    %s46 = sadd.s32 0, 0
    %s47 = smul.u32 2, %s46
    %p48 = scmp.eq.s32.totalorder 0, 0
    // Predicated region
    $region18: #{tpu_custom_call.1} parent=1 // pred_check
      %p49 = pneg %p48
    $region19: #{tpu_custom_call.1} parent=1 // pred_check_branch
      %51 = sbr.rel (%p49) target = $region21
    $region20: #{tpu_custom_call.1} parent=1 // pred_region
      %52 = vst [vmem:[#allocation7] sm:$0xff] 0.0
      %53 = vst [vmem:[#allocation7 + $0x8] sm:$0xff] 0.0
      %54 = vst [vmem:[#allocation7 + $0x10] sm:$0xff] 0.0
      %55 = vst [vmem:[#allocation7 + $0x18] sm:$0xff] 0.0
    $region21: #{tpu_custom_call.1} parent=1 // pred_fallthru
      _
    %v56 = vld [vmem:[#allocation2] sm:$0xff]
    %v57 = vld [vmem:[#allocation2 + $0x8] sm:$0xff]
    %v58 = vld [vmem:[#allocation5] sm:$0xff]
    %v59 = vld [vmem:[#allocation5 + $0x8] sm:$0xff]
    %v60 = vand.u32 2147483647, %v56
    %v61 = vand.u32 2147483647, %v57
    %v62 = vsub.f32 0.0, %v60
    %v63 = vsub.f32 0.0, %v61
    %v64 = vmul.f32 %v62, 1.442695
    %v65 = vpow.pop %v64
    %v66 = vmul.f32 %v63, 1.442695
    %v67 = vpow.pop %v66
    %v68 = vadd.f32 %v65, 1.0
    %v69 = vadd.f32 %v67, 1.0
    %v70 = vrcp.pop %v68
    %v71 = vmul.f32 1.0, %v70
    %v72 = vrcp.pop %v69
    %v73 = vmul.f32 1.0, %v72
    %vm74 = vcmp.ge.f32.partialorder %v56, 0.0
    %vm75 = vcmp.ge.f32.partialorder %v57, 0.0
    %v76 = vmul.f32 %v65, %v71
    %v77 = vmul.f32 %v67, %v73
    %v78 = vsel %vm74, %v71, %v76
    %v79 = vsel %vm75, %v73, %v77
    %v80 = vmax.f32 %v56, 0.0
    %v81 = vmax.f32 %v57, 0.0
    %v82 = vmul.f32 %v56, %v58
    %v83 = vmul.f32 %v57, %v59
    %v84 = vsub.f32 %v80, %v82
    %v85 = vsub.f32 %v81, %v83
    %v86 = vadd.f32 %v65, 1.0
    %v87 = vlog2.pop %v86
    %v88 = vmul.f32 %v87, 0.6931472
    %v89 = vmul.f32 -0.5, %v65
    %v90 = vadd.f32 %v89, 1.0
    %v91 = vmul.f32 %v90, %v65
    %v92 = vand.u32 2147483647, %v65
    %vm93 = vcmp.lt.f32.partialorder %v92, 0.0004427343
    %v94 = vsel %vm93, %v91, %v88
    %v95 = vadd.f32 %v67, 1.0
    %v96 = vlog2.pop %v95
    %v97 = vmul.f32 %v96, 0.6931472
    %v98 = vmul.f32 -0.5, %v67
    %v99 = vadd.f32 %v98, 1.0
    %v100 = vmul.f32 %v99, %v67
    %v101 = vand.u32 2147483647, %v67
    %vm102 = vcmp.lt.f32.partialorder %v101, 0.0004427343
    %v103 = vsel %vm102, %v100, %v97
    %v104 = vadd.f32 %v84, %v94
    %v105 = vadd.f32 %v85, %v103
    %v106 = vmul.f32 %v78, %v58
    %v107 = vmul.f32 %v79, %v59
    %v108 = vadd.f32 %v78, %v58
    %v109 = vadd.f32 %v79, %v59
    %v110 = vmul.f32 %v106, 2.0
    %v111 = vmul.f32 %v107, 2.0
    %v112 = vsub.f32 %v108, %v110
    %v113 = vsub.f32 %v109, %v111
    %v114 = vmul.f32 %v112, %v112
    %v115 = vmul.f32 %v113, %v113
    %v116 = vmul.f32 %v58, -0.5
    %v117 = vmul.f32 %v59, -0.5
    %v118 = vadd.f32 %v116, 0.75
    %v119 = vadd.f32 %v117, 0.75
    %v120 = vmul.f32 %v118, %v104
    %v121 = vmul.f32 %v119, %v105
    %v122 = vmul.f32 %v120, %v114
    %v123 = vmul.f32 %v121, %v115
    %v124 = vadd.f32 %v122, %v123
    %v125 = vadd.f32 %v106, %v107
    %v126 = vadd.f32 %v58, %v59
    %v127 = vadd.f32 %v78, %v79
    %v128 = vld [vmem:[#allocation7] sm:$0xff]
    %v129 = vadd.f32 %v128, %v124
    %130 = vst [vmem:[#allocation7] sm:$0xff] %v129
    %s131 = scalar_lea.vmem [#allocation7], 8
    %v132 = vld [vmem:[%s131] sm:$0xff]
    %v133 = vadd.f32 %v132, %v125
    %134 = vst [vmem:[%s131] sm:$0xff] %v133
    %s135 = scalar_lea.vmem [#allocation7], 16
    %v136 = vld [vmem:[%s135] sm:$0xff]
    %v137 = vadd.f32 %v136, %v126
    %138 = vst [vmem:[%s135] sm:$0xff] %v137
    %s139 = scalar_lea.vmem [#allocation7], 24
    %v140 = vld [vmem:[%s139] sm:$0xff]
    %v141 = vadd.f32 %v140, %v127
    %142 = vst [vmem:[%s139] sm:$0xff] %v141
    // Predicated region
    $region22: #{tpu_custom_call.1} parent=1 // pred_check
      _
    $region23: #{tpu_custom_call.1} parent=1 // pred_check_branch
      %144 = sbr.rel (0) target = $region25
    $region24: #{tpu_custom_call.1} parent=1 // pred_region
      %s146 = ssub.s32 512, 512
      %147 = vsyncadd [#allocation4], %s146
      %s148 = sshll.u32 [#allocation7], 4
      %s149 = int_to_ptr.vmem [resolvable:$true] %s148
      %154 = dma.vmem_to_hbm [thread:$0]  %s149, 512, %s2, [#allocation4], 128, 128, 8
    $region25: #{tpu_custom_call.1} parent=1 // pred_fallthru
      _
    // Predicated region
    $region26: #{tpu_custom_call.1} parent=1 // pred_check
      _
    $region27: #{tpu_custom_call.1} parent=1 // pred_check_branch
      %156 = sbr.rel (0) target = $region29
    $region28: #{tpu_custom_call.1} parent=1 // pred_region
      %157 = dma.done [#allocation4], 512
    $region29: #{tpu_custom_call.1} parent=1 // pred_fallthru
      _
    %158 = vsyncpa [#allocation3], 1
    %159 = vsyncpa [#allocation6], 1
    %160 = vsyncpa [#allocation4], 1

</llo_original>
